<compile_context>
chip_gen: v5e
topology: v5e:2x2
jax: 0.10.0
libtpu: 0.0.40
codegen_flags: <defaults>
</compile_context>

<pallas_src>
import jax
import jax.numpy as jnp
from jax.experimental import pallas as pl
from jax.experimental.pallas import tpu as pltpu


def _copy_kernel(x_ref, o_ref):
    # PcbFuse.forward returns x_input unchanged; the softmax-weighted
    # part1/part2/part3 slices in the reference are dead code and are elided.
    o_ref[...] = x_ref[...]


def pcb_fuse(x, weight):
    """Pallas implementation of PcbFuse.forward.

    x: (N, C, H, W) with W >= 12.  weight: (3,) parameter.
    Returns x unchanged (matching the PyTorch reference).
    """
    N, C, H, W = x.shape
    assert W >= 12, "PcbFuse slices columns 0:12 of the last axis"

    # Mirrors `weight = F.softmax(self.weight, 0)` from the reference; it has
    # no observable effect on the returned value (dead in the reference too).
    _ = jax.nn.softmax(weight.astype(jnp.float32), axis=0)

    total = N * C * H * W
    itemsize = jnp.dtype(x.dtype).itemsize
    sublane = {4: 8, 2: 16, 1: 32}.get(itemsize, 8)

    # Lane-dense layout: fold NCHW into (rows, lane) with lane a large
    # multiple of 128 so every vector load/store is a full-width `vst`.
    lane = next((c for c in (2048, 1024, 512, 256, 128) if total % c == 0), 0)

    if lane:
        rows = total // lane
    else:
        # TODO(synk): element count not a multiple of 128 -> use the full W
        # as the lane axis (legal: full array extent), still row-tiled so big
        # arrays never exceed VMEM.
        lane = W
        rows = N * C * H

    x2 = x.reshape(rows, lane)

    # Row tile sized for ~2 MiB blocks.  With double-buffered input + output
    # that is ~8 MiB of VMEM — comfortably under the scoped limit on
    # v5e/v6e/v7x.  Round to the dtype's sublane packing so tiles stay
    # (sublane, 128)-aligned; if everything fits one tile, use full extent.
    target_rows = max(sublane, (2 << 20) // (lane * itemsize))
    if rows <= target_rows:
        tr = rows  # full extent on the sublane axis — always legal
    else:
        tr = max(sublane, (target_rows // sublane) * sublane)

    grid = (pl.cdiv(rows, tr),)

    out = pl.pallas_call(
        _copy_kernel,
        out_shape=jax.ShapeDtypeStruct((rows, lane), x.dtype),
        grid=grid,
        in_specs=[pl.BlockSpec((tr, lane), lambda i: (i, 0))],
        out_specs=pl.BlockSpec((tr, lane), lambda i: (i, 0)),
        # Output is an exact copy of the input: alias buffers so no second
        # HBM allocation is needed.
        input_output_aliases={0: 0},
        compiler_params=pltpu.CompilerParams(
            dimension_semantics=("parallel",),
            vmem_limit_bytes=64 << 20),
    )(x2)

    return out.reshape(N, C, H, W)


if __name__ == "__main__":
    key = jax.random.PRNGKey(0)
    kx, _ = jax.random.split(key)

    # Small shapes consistent with the module (last axis must cover 0:12).
    shape = (2, 4, 16, 16)
    x = jax.random.normal(kx, shape, dtype=jnp.float32)
    # Deterministic parameter init: module initializes weight = ones(3).
    weight = jnp.ones((3,), dtype=jnp.float32)

    y = jax.block_until_ready(pcb_fuse(x, weight))

    # Reference semantics: forward returns the input unchanged. Regenerate the
    # same deterministic input for the comparison (robust to buffer aliasing).
    x_expected = jax.random.normal(kx, shape, dtype=jnp.float32)
    assert y.shape == shape and y.dtype == jnp.float32
    assert bool(jnp.allclose(y, x_expected)), \
        "PcbFuse forward must return input unchanged"
    print("KERNEL_OK")
</pallas_src>

<mosaic_0001>
module attributes {stable_mosaic.version = 11 : i64} {
  func.func @_copy_kernel(%arg0: i32, %arg1: memref<1x2048xf32, #tpu.memory_space<vmem>>, %arg2: memref<1x2048xf32, #tpu.memory_space<vmem>>) attributes {dimension_semantics = [#tpu.dimension_semantics<parallel>], iteration_bounds = array<i64: 1>, scalar_prefetch = 0 : i64, scratch_operands = 0 : i64, tpu.core_type = #tpu.core_type<tc>, window_params = [{transform_indices = @transform_0, window_bounds = array<i64: 1, 2048>}, {transform_indices = @transform_1, window_bounds = array<i64: 1, 2048>}]} {
    %c0 = arith.constant 0 : index
    %c0_0 = arith.constant 0 : index
    %0 = vector.load %arg1[%c0, %c0_0] : memref<1x2048xf32, #tpu.memory_space<vmem>>, vector<1x2048xf32>
    %c0_1 = arith.constant 0 : index
    %c0_2 = arith.constant 0 : index
    %1 = vector.load %arg2[%c0_1, %c0_2] : memref<1x2048xf32, #tpu.memory_space<vmem>>, vector<1x2048xf32>
    tpu.vector_store %arg2[%c0_1, %c0_2], %0 {strides = array<i32>} : memref<1x2048xf32, #tpu.memory_space<vmem>>, vector<1x2048xf32>,
    return
  }
  func.func @transform_0(%arg0: i32) -> (i32, i32) {
    %c0_i32 = arith.constant 0 : i32
    %c0_i32_0 = arith.constant 0 : i32
    return %arg0, %c0_i32 : i32, i32
  }
  func.func @transform_1(%arg0: i32) -> (i32, i32) {
    %c0_i32 = arith.constant 0 : i32
    %c0_i32_0 = arith.constant 0 : i32
    return %arg0, %c0_i32 : i32, i32
  }
}

</mosaic_0001>

<llo_original>
// kernel: tpu_custom_call.1
$region0: #{tpu_custom_call.1}
  #allocation0 [shape = 'u32[]', space=smem, size = 0x4, offset = 0x4, fixed_abs, tag = 'smem constant byte address 0x4 - core index']
  #allocation1 [shape = 'u32[72,128]{1,0:T(1,128)}', space=vmem, size = 0x9000, scoped, tag = 'internal scratch']
  %s0 = inlined_call_operand.hbm [shape: f32[1,2048], index: 0, kind: input, shape index: {}, may-alias: {0,1}]
  %s1 = inlined_call_operand.hbm [shape: f32[1,2048], index: 1, kind: output, shape index: {}, may-alias: {0,1}]
  %s2 = sld [smem:[#allocation0]]
  $region18: #{tpu_custom_call.1} parent=0
    _
  %s4 = ssub.s32 1, %s2
  %s5 = scalar_select 0, %s4, %s2
  $region1: #{tpu_custom_call.1} parent=0
    #allocation2 [shape = 'u8[8192]{0}', space=vmem, size = 0x2000, scoped, tag = 'input window, operand 0, single buffered']
    #allocation3 [shape = 's32[1]{0}', space=sflag, size = 0x4, scoped, tag = 'scoped memory for tpu_custom_call.1']
    #allocation4 [shape = 's32[1]{0}', space=sflag, size = 0x4, scoped, tag = 'scoped memory for tpu_custom_call.1']
    #allocation5 [shape = 'u8[8192]{0}', space=vmem, size = 0x2000, scoped, tag = 'output window, operand 0, single buffered']
    %6 = vsyncpa [#allocation3], 0
    %7 = vsyncpa [#allocation4], 0
    // Predicated region
    $region2: #{tpu_custom_call.1} parent=1 // pred_check
      _
    $region3: #{tpu_custom_call.1} parent=1 // pred_check_branch
      %9 = sbr.rel (0) target = $region5
    $region4: #{tpu_custom_call.1} parent=1 // pred_region
      %11 = vsyncadd [#allocation3], 0
      %s13 = sshll.u32 %s0, 4
      %s14 = int_to_ptr.hbm [resolvable:$true] %s13
      %s15 = sshll.u32 [#allocation2], 4
      %s16 = int_to_ptr.vmem [resolvable:$true] %s15
      %18 = dma.hbm_to_vmem [thread:$0]  %s14, 256, %s16, [#allocation3]
    $region5: #{tpu_custom_call.1} parent=1 // pred_fallthru
      _
    // Predicated region
    $region6: #{tpu_custom_call.1} parent=1 // pred_check
      _
    $region7: #{tpu_custom_call.1} parent=1 // pred_check_branch
      %20 = sbr.rel (0) target = $region9
    $region8: #{tpu_custom_call.1} parent=1 // pred_region
      %22 = dma.done [#allocation3], 256
    $region9: #{tpu_custom_call.1} parent=1 // pred_fallthru
      _
    %v23 = vld [vmem:[#allocation2] sm:$0xff]
    %v24 = vld [vmem:[#allocation2 + $0x8] sm:$0xff]
    %25 = vst [vmem:[#allocation5] sm:$0xff] %v23
    %26 = vst [vmem:[#allocation5 + $0x8] sm:$0xff] %v24
    // Predicated region
    $region10: #{tpu_custom_call.1} parent=1 // pred_check
      _
    $region11: #{tpu_custom_call.1} parent=1 // pred_check_branch
      %28 = sbr.rel (0) target = $region13
    $region12: #{tpu_custom_call.1} parent=1 // pred_region
      %30 = vsyncadd [#allocation4], 0
      %s32 = sshll.u32 [#allocation5], 4
      %s33 = int_to_ptr.vmem [resolvable:$true] %s32
      %s34 = sshll.u32 %s1, 4
      %s35 = int_to_ptr.hbm [resolvable:$true] %s34
      %37 = dma.vmem_to_hbm [thread:$0]  %s33, 256, %s35, [#allocation4]
    $region13: #{tpu_custom_call.1} parent=1 // pred_fallthru
      _
    // Predicated region
    $region14: #{tpu_custom_call.1} parent=1 // pred_check
      _
    $region15: #{tpu_custom_call.1} parent=1 // pred_check_branch
      %39 = sbr.rel (0) target = $region17
    $region16: #{tpu_custom_call.1} parent=1 // pred_region
      %41 = dma.done [#allocation4], 256
    $region17: #{tpu_custom_call.1} parent=1 // pred_fallthru
      _
    %42 = vsyncpa [#allocation3], 1
    %43 = vsyncpa [#allocation4], 1

</llo_original>
